<compile_context>
chip_gen: v7x
topology: tpu7x:2x2x1
jax: 0.10.0
libtpu: 0.0.40
codegen_flags: <defaults>
</compile_context>

<pallas_src>
import functools

import jax
import jax.numpy as jnp
from jax import lax
from jax.experimental import pallas as pl
from jax.experimental.pallas import tpu as pltpu


def _round_up(x: int, m: int) -> int:
    return (x + m - 1) // m * m


def _pos_embedding_padded(num_rows: int, hidden: int, h_pad: int) -> jnp.ndarray:
    """Same construction as SinusoidalEmbedding._get_pos_embedding, lane-padded."""
    pos = jnp.arange(num_rows, dtype=jnp.float32)[:, None]
    i = jnp.arange(0, hidden, 2, dtype=jnp.float32)
    angle = pos / (10000.0 ** (i / hidden))
    pe = jnp.zeros((num_rows, h_pad), dtype=jnp.float32)
    pe = pe.at[:, 0:hidden:2].set(jnp.sin(angle))
    pe = pe.at[:, 1:hidden:2].set(jnp.cos(angle))
    return pe


# --------------------------------------------------------------------------
# Fast path: VMEM-resident table, one-hot gather on the MXU (small vocab).
# --------------------------------------------------------------------------
def _onehot_kernel(tok_ref, table_ref, pos_ref, out_ref):
    # tok_ref:   (TILE_S, 1)     int32  token ids for this (seq-tile, batch)
    # table_ref: (V_pad, H_pad)  f32    full table, VMEM-resident (const index)
    # pos_ref:   (TILE_S, H_pad) f32    positional slab for this seq tile
    # out_ref:   (TILE_S, H_pad) f32
    tile_s = out_ref.shape[0]
    v_pad = table_ref.shape[0]
    tok = tok_ref[...]                                            # (TILE_S, 1)
    vocab_ids = lax.broadcasted_iota(jnp.int32, (tile_s, v_pad), 1)
    one_hot = (vocab_ids == tok).astype(jnp.float32)
    tok_emb = jnp.dot(one_hot, table_ref[...],
                      preferred_element_type=jnp.float32)
    out_ref[...] = tok_emb + pos_ref[...]


# --------------------------------------------------------------------------
# Large-vocab path: HBM-resident table, per-row DMA gather.
# --------------------------------------------------------------------------
def _gather_kernel(tok_smem, table_hbm, pos_ref, out_ref, row_buf, sem, *,
                   tile_s: int, s_pad: int):
    # tok_smem:  SMEM (B*S_pad,) int32  scalar-prefetched, flattened token ids
    # table_hbm: HBM  (V, H_pad) f32    embedding table (not auto-pipelined)
    # pos_ref:   VMEM (TILE_S, H_pad)   positional slab (pipelined input)
    # out_ref:   VMEM (TILE_S, H_pad)
    # row_buf:   VMEM (TILE_S, H_pad)   gathered rows scratch
    # sem:       single shared DMA semaphore (all row copies are equal-sized)
    si = pl.program_id(0)
    b = pl.program_id(1)
    base = b * s_pad + si * tile_s

    chunk = 8  # 8-way unrolled issue/wait loops (tile_s is a multiple of 8)

    # 1) Issue all row-gather DMAs for this tile (HBM table row -> VMEM row).
    @pl.loop(0, tile_s // chunk)
    def _issue(c):
        for u in range(chunk):
            j = c * chunk + u
            tok = tok_smem[base + j]
            pltpu.make_async_copy(
                table_hbm.at[pl.ds(tok, 1)],
                row_buf.at[pl.ds(j, 1)],
                sem.at[0],
            ).start()

    # 2) Wait for all of them, reconstructing *identical* descriptors (same
    #    src slice as the issue, re-read from SMEM) so byte counts match.
    @pl.loop(0, tile_s // chunk)
    def _wait(c):
        for u in range(chunk):
            j = c * chunk + u
            tok = tok_smem[base + j]
            pltpu.make_async_copy(
                table_hbm.at[pl.ds(tok, 1)],
                row_buf.at[pl.ds(j, 1)],
                sem.at[0],
            ).wait()

    # 3) Add the (precomputed) positional slab and store one lane-dense slab.
    out_ref[...] = row_buf[...] + pos_ref[...]


# --------------------------------------------------------------------------
# Wrapper
# --------------------------------------------------------------------------
def sinusoidal_embedding_forward(x: jnp.ndarray,
                                 token_table: jnp.ndarray,
                                 *,
                                 force_dma_gather: bool = False,
                                 vmem_table_budget: int = 4 << 20) -> jnp.ndarray:
    """x: [B, S] int token ids -> [B, S, H] float32 = token_emb(x) + pos_emb."""
    B, S = x.shape
    V, H = token_table.shape
    assert H % 2 == 0, "sinusoidal embedding assumes even hidden_size"

    H_pad = _round_up(H, 128)  # lane-dense stores / gathers

    # Tile over the sequence axis; cap by a conservative VMEM budget so the
    # kernel also fits v7x's 64 MiB VMEM (pos + out double-buffered + row_buf).
    TILE_S = min(512, _round_up(S, 8))
    while TILE_S > 8 and 5 * TILE_S * H_pad * 4 > (12 << 20):
        TILE_S //= 2
    TILE_S = max(8, (TILE_S // 8) * 8)
    S_pad = _round_up(S, TILE_S)
    num_s_tiles = S_pad // TILE_S

    # Clamp ids to a valid range (nn.Embedding would raise for OOB ids; here a
    # clamp guarantees no out-of-bounds DMA / garbage gather) and pad along S
    # with padding_idx=1 (a valid row; padded positions are sliced off).
    ids = jnp.clip(x.astype(jnp.int32), 0, V - 1)
    tok = jnp.full((B, S_pad), 1, dtype=jnp.int32).at[:, :S].set(ids)

    # Positional table, computed once on the host-side JAX graph (no in-kernel
    # exp/sin/cos), padded to S_pad rows and H_pad lanes.
    pos_emb = _pos_embedding_padded(S_pad, H, H_pad)

    # Lane-pad the table (in a real model this is done once at parameter init).
    table = token_table.astype(jnp.float32)
    if H_pad != H:
        table = jnp.pad(table, ((0, 0), (0, H_pad - H)))

    cparams = pltpu.CompilerParams(
        dimension_semantics=("parallel", "parallel"),
        vmem_limit_bytes=32 * 1024 * 1024,
    )
    out_shape = jax.ShapeDtypeStruct((B, S_pad, H_pad), jnp.float32)

    V_pad = _round_up(V, 8)
    use_fast = (not force_dma_gather) and (V_pad * H_pad * 4 <= vmem_table_budget)

    if use_fast:
        if V_pad != V:
            table = jnp.pad(table, ((0, V_pad - V), (0, 0)))
        tok3 = tok.reshape(B, S_pad, 1)
        out = pl.pallas_call(
            _onehot_kernel,
            out_shape=out_shape,
            grid_spec=pltpu.PrefetchScalarGridSpec(
                num_scalar_prefetch=0,
                grid=(num_s_tiles, B),
                in_specs=[
                    pl.BlockSpec((None, TILE_S, 1), lambda si, b: (b, si, 0)),
                    pl.BlockSpec((V_pad, H_pad), lambda si, b: (0, 0)),
                    pl.BlockSpec((TILE_S, H_pad), lambda si, b: (si, 0)),
                ],
                out_specs=pl.BlockSpec((None, TILE_S, H_pad),
                                       lambda si, b: (b, si, 0)),
            ),
            compiler_params=cparams,
        )(tok3, table, pos_emb)
    else:
        kernel = functools.partial(_gather_kernel, tile_s=TILE_S, s_pad=S_pad)
        out = pl.pallas_call(
            kernel,
            out_shape=out_shape,
            grid_spec=pltpu.PrefetchScalarGridSpec(
                num_scalar_prefetch=1,                          # token ids -> SMEM
                grid=(num_s_tiles, B),
                in_specs=[
                    pl.BlockSpec(memory_space=pl.ANY),          # table stays in HBM
                    pl.BlockSpec((TILE_S, H_pad), lambda si, b, t: (si, 0)),
                ],
                out_specs=pl.BlockSpec((None, TILE_S, H_pad),
                                       lambda si, b, t: (b, si, 0)),
                scratch_shapes=[
                    pltpu.VMEM((TILE_S, H_pad), jnp.float32),
                    pltpu.SemaphoreType.DMA((1,)),
                ],
            ),
            compiler_params=cparams,
        )(tok.reshape(-1), table, pos_emb)

    return out[:, :S, :H]


if __name__ == "__main__":
    # Small shapes consistent with the module's forward.
    batch, seq_len, hidden_size, vocab_size = 2, 8, 32, 16
    padding_idx = 1

    key = jax.random.PRNGKey(0)
    k_tok, k_emb = jax.random.split(key)

    # nn.Embedding-style init: N(0,1), padding row zeroed.
    token_table = jax.random.normal(k_emb, (vocab_size, hidden_size),
                                    dtype=jnp.float32)
    token_table = token_table.at[padding_idx, :].set(0.0)

    # Input tokens: [B, S] int32 ids in [0, vocab_size)
    x = jax.random.randint(k_tok, (batch, seq_len), 0, vocab_size,
                           dtype=jnp.int32)

    # Reference in plain JAX: token_emb(x) + pos_emb
    ref = token_table[x] + _pos_embedding_padded(seq_len, hidden_size,
                                                 hidden_size)[None, :, :]

    # Fast path (VMEM-resident table, one-hot MXU gather).
    out_fast = jax.block_until_ready(
        sinusoidal_embedding_forward(x, token_table))
    assert out_fast.shape == (batch, seq_len, hidden_size)
    assert jnp.allclose(out_fast, ref, atol=1e-4, rtol=1e-4), \
        float(jnp.max(jnp.abs(out_fast - ref)))

    # Large-vocab path (HBM table + per-row DMA gather), forced for coverage.
    out_gather = jax.block_until_ready(
        sinusoidal_embedding_forward(x, token_table, force_dma_gather=True))
    assert jnp.allclose(out_gather, ref, atol=1e-4, rtol=1e-4), \
        float(jnp.max(jnp.abs(out_gather - ref)))

    print("KERNEL_OK")
</pallas_src>

<mosaic_0001>
module attributes {stable_mosaic.version = 11 : i64} {
  func.func @_onehot_kernel(%arg0: i32, %arg1: i32, %arg2: memref<1x8x1xi32, #tpu.memory_space<vmem>>, %arg3: memref<16x128xf32, #tpu.memory_space<vmem>>, %arg4: memref<8x128xf32, #tpu.memory_space<vmem>>, %arg5: memref<1x8x128xf32, #tpu.memory_space<vmem>>) attributes {dimension_semantics = [#tpu.dimension_semantics<parallel>, #tpu.dimension_semantics<parallel>], iteration_bounds = array<i64: 1, 2>, scalar_prefetch = 0 : i64, scratch_operands = 0 : i64, tpu.core_type = #tpu.core_type<tc>, window_params = [{transform_indices = @transform_0, window_bounds = array<i64: 1, 8, 1>}, {pipeline_mode = #tpu.pipeline_mode<synchronous>, transform_indices = @transform_1, window_bounds = array<i64: 16, 128>}, {transform_indices = @transform_2, window_bounds = array<i64: 8, 128>}, {transform_indices = @transform_3, window_bounds = array<i64: 1, 8, 128>}]} {
    %c0 = arith.constant 0 : index
    %c0_0 = arith.constant 0 : index
    %c0_1 = arith.constant 0 : index
    %0 = vector.load %arg2[%c0, %c0_0, %c0_1] : memref<1x8x1xi32, #tpu.memory_space<vmem>>, vector<1x8x1xi32>
    %1 = vector.shape_cast %0 : vector<1x8x1xi32> to vector<8x1xi32>
    %2 = tpu.iota {dimensions = array<i32: 1>} : vector<8x16xi32>
    %3 = vector.broadcast %1 : vector<8x1xi32> to vector<8x16xi32>
    %4 = arith.cmpi eq, %2, %3 : vector<8x16xi32>
    %5 = arith.extui %4 : vector<8x16xi1> to vector<8x16xi32>
    %6 = arith.sitofp %5 : vector<8x16xi32> to vector<8x16xf32>
    %c0_2 = arith.constant 0 : index
    %c0_3 = arith.constant 0 : index
    %7 = vector.load %arg3[%c0_2, %c0_3] : memref<16x128xf32, #tpu.memory_space<vmem>>, vector<16x128xf32>
    %cst = arith.constant dense<0.000000e+00> : vector<8x128xf32>
    %8 = tpu.matmul %6, %7, %cst {dimension_numbers = #tpu.dot_dimension_numbers<[1], [0], [0], [1], [0, 0, 1, 1], [], []>} : vector<8x16xf32>, vector<16x128xf32>, vector<8x128xf32> -> vector<8x128xf32>
    %c0_4 = arith.constant 0 : index
    %c0_5 = arith.constant 0 : index
    %9 = vector.load %arg4[%c0_4, %c0_5] : memref<8x128xf32, #tpu.memory_space<vmem>>, vector<8x128xf32>
    %10 = arith.addf %8, %9 : vector<8x128xf32>
    %c0_6 = arith.constant 0 : index
    %c0_7 = arith.constant 0 : index
    %c0_8 = arith.constant 0 : index
    %11 = vector.load %arg5[%c0_6, %c0_7, %c0_8] : memref<1x8x128xf32, #tpu.memory_space<vmem>>, vector<1x8x128xf32>
    %12 = vector.shape_cast %11 : vector<1x8x128xf32> to vector<8x128xf32>
    %13 = vector.shape_cast %10 : vector<8x128xf32> to vector<1x8x128xf32>
    tpu.vector_store %arg5[%c0_6, %c0_7, %c0_8], %13 {strides = array<i32>} : memref<1x8x128xf32, #tpu.memory_space<vmem>>, vector<1x8x128xf32>,
    return
  }
  func.func @transform_0(%arg0: i32, %arg1: i32) -> (i32, i32, i32) {
    %c0_i32 = arith.constant 0 : i32
    %c0_i32_0 = arith.constant 0 : i32
    return %arg1, %arg0, %c0_i32 : i32, i32, i32
  }
  func.func @transform_1(%arg0: i32, %arg1: i32) -> (i32, i32) {
    %c0_i32 = arith.constant 0 : i32
    %c0_i32_0 = arith.constant 0 : i32
    %c0_i32_1 = arith.constant 0 : i32
    return %c0_i32, %c0_i32_0 : i32, i32
  }
  func.func @transform_2(%arg0: i32, %arg1: i32) -> (i32, i32) {
    %c0_i32 = arith.constant 0 : i32
    %c0_i32_0 = arith.constant 0 : i32
    return %arg0, %c0_i32 : i32, i32
  }
  func.func @transform_3(%arg0: i32, %arg1: i32) -> (i32, i32, i32) {
    %c0_i32 = arith.constant 0 : i32
    %c0_i32_0 = arith.constant 0 : i32
    return %arg1, %arg0, %c0_i32 : i32, i32, i32
  }
}

</mosaic_0001>

<llo_original>
// kernel: tpu_custom_call.1
$region0: #{tpu_custom_call.1}
  #allocation0 [shape = 'u32[]', space=smem, size = 0x4, offset = 0x4, fixed_abs, tag = 'smem constant byte address 0x4 - core index']
  #allocation1 [shape = 'u32[144,128]{1,0:T(1,128)}', space=vmem, size = 0x12000, scoped, tag = 'internal scratch']
  %s0 = inlined_call_operand.vmem [shape: s32[2,8,1], index: 0, kind: input, shape index: {}]
  %s1 = inlined_call_operand.vmem [shape: f32[16,128], index: 1, kind: input, shape index: {}]
  %s2 = inlined_call_operand.vmem [shape: f32[8,128], index: 2, kind: input, shape index: {}]
  %s3 = inlined_call_operand.hbm [shape: f32[2,8,128], index: 3, kind: output, shape index: {}]
  %s4 = sld [smem:[#allocation0]]
  $region45: #{tpu_custom_call.1} parent=0
    _
  %s6 = ssub.s32 1, %s4
  %s7 = scalar_select 0, %s6, %s4
  $region1: #{tpu_custom_call.1} parent=0
    #allocation2 [shape = 'u8[8192]{0}', space=vmem, size = 0x2000, scoped, tag = 'output window, operand 0']
    #allocation3 [shape = 's32[2]{0}', space=sflag, size = 0x8, scoped, tag = 'scoped memory for tpu_custom_call.1']
    %8 = vsyncpa [#allocation3], 0
    %s9 = scalar_lea.sflag [#allocation3], 1
    %10 = vsyncpa %s9, 0
    loop: start=0, step=1, limit=4
    $region2: #{tpu_custom_call.1} parent=1 // loop_pre_header
      _
    $region3: #{tpu_custom_call.1} parent=1 // loop_header
      %s12 = sphi 0, %s16
      %p13 = scmp.ge.s32.totalorder %s12, 4
      %s19 = sphi 0, %s31
      %s20 = sphi 0, %s27
      %s21 = sphi 0, %s19
      %s22 = sphi 0, %s20
      %s23 = sphi 0, %s21
      %s24 = sphi 0, %s22
      %s36 = sphi 0, %s38
      %s39 = sphi 0, %s36
      %s40 = sphi 0, %s39
      %s56 = sphi 0, %s40
      %s60 = sphi 0, %s60
      %s62 = sphi 0, %s60
      %s63 = sphi 0, %s62
      %s77 = sphi 0, %s63
      %s83 = sphi 0, %s85
      %s86 = sphi 0, %s83
      %s87 = sphi 0, %s86
      %s103 = sphi 0, %s87
      %s111 = sphi 0, %s113
      %s114 = sphi 0, %s111
      %s115 = sphi 0, %s114
      %s131 = sphi 0, %s115
    $region4: #{tpu_custom_call.1} parent=1 // loop_header_branch
      %15 = sbr.rel (%p13) target = $region8
    $region5: #{tpu_custom_call.1} parent=1 // loop_body
      %s17 = ssub.s32 %s12, 1
      %s18 = ssub.s32 %s12, 2
      %s25 = sadd.s32 1, %s20
      %p26 = scmp.ge.s32.totalorder %s25, 2
      %s27 = scalar_select %p26, 0, %s25
      %s28 = sadd.s32 1, %s19
      %s29 = scalar_select %p26, %s28, %s19
      %p30 = scmp.ge.s32.totalorder %s29, 1
      %s31 = scalar_select %p30, 0, %s29
      %s32 = ssub.s32 %s20, %s27
      %s33 = ssub.s32 %s19, %s31
      %s34 = sor.u32 %s32, %s33
      %p35 = scmp.eq.s32.totalorder %s34, 0
      %s37 = sadd.s32 %s36, 1
      %s38 = scalar_select %p35, %s36, %s37
      %p41 = pneg %p35
      %p42 = scmp.eq.s32.totalorder %s12, 1
      %p43 = por %p41, %p42
      %p44 = scmp.ne.s32.totalorder %s36, %s39
      %p45 = scmp.eq.s32.totalorder %s12, 0
      %p46 = por %p44, %p45
      %p47 = scmp.ne.s32.totalorder %s36, %s39
      %p48 = scmp.eq.s32.totalorder %s17, 1
      %p49 = por %p47, %p48
      %p50 = scmp.ne.s32.totalorder %s39, %s40
      %p51 = scmp.eq.s32.totalorder %s17, 0
      %p52 = por %p50, %p51
      %p53 = scmp.ne.s32.totalorder %s39, %s40
      %p54 = scmp.eq.s32.totalorder %s18, 1
      %p55 = por %p53, %p54
      %p57 = scmp.ne.s32.totalorder %s40, %s56
      %p58 = scmp.eq.s32.totalorder %s18, 0
      %p59 = por %p57, %p58
      %s61 = sadd.s32 %s60, 1
      %p64 = scmp.eq.s32.totalorder %s12, 1
      %p65 = scmp.ne.s32.totalorder %s60, %s62
      %p66 = scmp.eq.s32.totalorder %s12, 0
      %p67 = por %p65, %p66
      %p68 = scmp.ne.s32.totalorder %s60, %s62
      %p69 = scmp.eq.s32.totalorder %s17, 1
      %p70 = por %p68, %p69
      %p71 = scmp.ne.s32.totalorder %s62, %s63
      %p72 = scmp.eq.s32.totalorder %s17, 0
      %p73 = por %p71, %p72
      %p74 = scmp.ne.s32.totalorder %s62, %s63
      %p75 = scmp.eq.s32.totalorder %s18, 1
      %p76 = por %p74, %p75
      %p78 = scmp.ne.s32.totalorder %s63, %s77
      %p79 = scmp.eq.s32.totalorder %s18, 0
      %p80 = por %p78, %p79
      %s81 = ssub.s32 %s19, %s31
      %p82 = scmp.eq.s32.totalorder %s81, 0
      %s84 = sadd.s32 %s83, 1
      %s85 = scalar_select %p82, %s83, %s84
      %p88 = pneg %p82
      %p89 = scmp.eq.s32.totalorder %s12, 1
      %p90 = por %p88, %p89
      %p91 = scmp.ne.s32.totalorder %s83, %s86
      %p92 = scmp.eq.s32.totalorder %s12, 0
      %p93 = por %p91, %p92
      %p94 = scmp.ne.s32.totalorder %s83, %s86
      %p95 = scmp.eq.s32.totalorder %s17, 1
      %p96 = por %p94, %p95
      %p97 = scmp.ne.s32.totalorder %s86, %s87
      %p98 = scmp.eq.s32.totalorder %s17, 0
      %p99 = por %p97, %p98
      %p100 = scmp.ne.s32.totalorder %s86, %s87
      %p101 = scmp.eq.s32.totalorder %s18, 1
      %p102 = por %p100, %p101
      %p104 = scmp.ne.s32.totalorder %s87, %s103
      %p105 = scmp.eq.s32.totalorder %s18, 0
      %p106 = por %p104, %p105
      %s107 = ssub.s32 %s20, %s27
      %s108 = ssub.s32 %s19, %s31
      %s109 = sor.u32 %s107, %s108
      %p110 = scmp.eq.s32.totalorder %s109, 0
      %s112 = sadd.s32 %s111, 1
      %s113 = scalar_select %p110, %s111, %s112
      %p116 = pneg %p110
      %p117 = scmp.eq.s32.totalorder %s12, 1
      %p118 = por %p116, %p117
      %p119 = scmp.ne.s32.totalorder %s111, %s114
      %p120 = scmp.eq.s32.totalorder %s12, 0
      %p121 = por %p119, %p120
      %p122 = scmp.ne.s32.totalorder %s111, %s114
      %p123 = scmp.eq.s32.totalorder %s17, 1
      %p124 = por %p122, %p123
      %p125 = scmp.ne.s32.totalorder %s114, %s115
      %p126 = scmp.eq.s32.totalorder %s17, 0
      %p127 = por %p125, %p126
      %p128 = scmp.ne.s32.totalorder %s114, %s115
      %p129 = scmp.eq.s32.totalorder %s18, 1
      %p130 = por %p128, %p129
      %p132 = scmp.ne.s32.totalorder %s115, %s131
      %p133 = scmp.eq.s32.totalorder %s18, 0
      %p134 = por %p132, %p133
      %p135 = scmp.le.s32.totalorder 1, %s12
      %p136 = scmp.lt.s32.totalorder %s12, 3
      %p137 = pnand %p135, %p136
      %p138 = pneg %p137
      // Predicated region
      $region9: #{tpu_custom_call.1} parent=5 // pred_check
        _
      $region10: #{tpu_custom_call.1} parent=5 // pred_check_branch
        %140 = sbr.rel (%p137) target = $region12
      $region11: #{tpu_custom_call.1} parent=5 // pred_region
        %s141 = ssub.s32 %s12, 1
        // Predicated region
        $region13: #{tpu_custom_call.1} parent=11 // pred_check
          %p142 = pneg %p73
        $region14: #{tpu_custom_call.1} parent=11 // pred_check_branch
          %144 = sbr.rel (%p142) target = $region16
        $region15: #{tpu_custom_call.1} parent=11 // pred_region
          _
        $region16: #{tpu_custom_call.1} parent=11 // pred_fallthru
          _
        // Predicated region
        $region17: #{tpu_custom_call.1} parent=11 // pred_check
          %p145 = pneg %p99
        $region18: #{tpu_custom_call.1} parent=11 // pred_check_branch
          %147 = sbr.rel (%p145) target = $region20
        $region19: #{tpu_custom_call.1} parent=11 // pred_region
          %p148 = scmp.lt.s32.totalorder %s21, 0
          %s149 = scalar_select %p148, %s21, 0
          %s150 = smul.addr %s149, 8
          %s151 = scalar_lea.vmem %s2, %s150
        $region20: #{tpu_custom_call.1} parent=11 // pred_fallthru
          _
      $region12: #{tpu_custom_call.1} parent=5 // pred_fallthru
        _
      %p152 = scmp.lt.s32.totalorder %s12, 2
      // Predicated region
      $region21: #{tpu_custom_call.1} parent=5 // pred_check
        %p153 = pneg %p152
      $region22: #{tpu_custom_call.1} parent=5 // pred_check_branch
        %155 = sbr.rel (%p153) target = $region24
      $region23: #{tpu_custom_call.1} parent=5 // pred_region
        // Predicated region
        $region25: #{tpu_custom_call.1} parent=23 // pred_check
          %p156 = pneg %p46
        $region26: #{tpu_custom_call.1} parent=23 // pred_check_branch
          %158 = sbr.rel (%p156) target = $region28
        $region27: #{tpu_custom_call.1} parent=23 // pred_region
          %p159 = scmp.lt.s32.totalorder %s20, 1
          %s160 = scalar_select %p159, %s20, 1
          %p161 = scmp.lt.s32.totalorder %s19, 0
          %s162 = scalar_select %p161, %s19, 0
          %s163 = sadd.s32 %s162, %s160
          %s164 = smul.addr %s163, 8
          %s165 = scalar_lea.vmem %s0, %s164
        $region28: #{tpu_custom_call.1} parent=23 // pred_fallthru
          _
      $region24: #{tpu_custom_call.1} parent=5 // pred_fallthru
        _
      %p166 = scmp.le.s32.totalorder 1, %s12
      %p167 = scmp.lt.s32.totalorder %s12, 3
      %p168 = pnand %p166, %p167
      %p169 = pneg %p168
      // Predicated region
      $region29: #{tpu_custom_call.1} parent=5 // pred_check
        _
      $region30: #{tpu_custom_call.1} parent=5 // pred_check_branch
        %171 = sbr.rel (%p168) target = $region32
      $region31: #{tpu_custom_call.1} parent=5 // pred_region
        %s172 = ssub.s32 %s12, 1
        %p173 = scmp.lt.s32.totalorder %s22, 1
        %s174 = scalar_select %p173, %s22, 1
        %p175 = scmp.lt.s32.totalorder %s21, 0
        %s176 = scalar_select %p175, %s21, 0
        %s177 = sadd.s32 %s176, %s174
        %s178 = smul.addr %s177, 8
        %s179 = scalar_lea.vmem %s0, %s178
        %p180 = pneg %p52
        %p181 = pneg %p49
        %p182 = pneg %p73
        %p183 = pneg %p70
        %p184 = scmp.lt.s32.totalorder %s21, 0
        %s185 = scalar_select %p184, %s21, 0
        %s186 = smul.addr %s185, 8
        %s187 = scalar_lea.vmem %s2, %s186
        %p188 = pneg %p99
        %p189 = pneg %p96
        %p190 = pneg %p127
        %p191 = pneg %p124
        %s192 = sand.u32 %s114, 1
        %s193 = scalar_lea.sflag [#allocation3], %s192
        %s194 = sand.u32 %s114, 1
        %s195 = smul.addr %s194, 8
        %s196 = scalar_lea.vmem [#allocation2], %s195
        %p197 = scmp.lt.s32.totalorder %s22, 1
        %s198 = scalar_select %p197, %s22, 1
        %p199 = scmp.lt.s32.totalorder %s21, 0
        %s200 = scalar_select %p199, %s21, 0
        %s201 = sadd.s32 %s200, %s198
        %s202 = smul.addr %s201, 8
        %s203 = scalar_lea.vmem %s0, %s202
        %p204 = scmp.lt.s32.totalorder %s21, 0
        %s205 = scalar_select %p204, %s21, 0
        %s206 = smul.addr %s205, 8
        %s207 = scalar_lea.vmem %s2, %s206
        %v208 = vld [vmem:[%s203] sm:$0xff]
        %v209 = vlaneseq
        %v210 = vand.u32 %v209, 127
        %211 = vset.pattern.permute.xlu0 0
        %212 = vperm.xlu0 %211, %v208
        %v213 = vpop.permute.xlu0 %212
        %vm214 = vcmp.eq.s32.totalorder %v210, %v213
        %v215 = vsel %vm214, 1, 0
        %v216 = vcvt.s32.f32 %v215
        %v217 = vld [vmem:[%s1] sm:$0xff]
        %v218 = vld [vmem:[%s1 + $0x8] sm:$0xff]
        %v219 = vld [vmem:[%s207] sm:$0xff]
        %vm220 = vcmask 130048
        %v222 = vsel %vm220, %v216, 0
        %224 = vmatprep.subr.mxu0 0.0
        %225 = vmatpush1.msra.mxu0 %v217
        %226 = vmatprep.subr.mxu0 0.0
        %227 = vmatpush1.msra.mxu0 %v218
        %228 = vmatprep.subr.mxu0 0.0
        %229 = vmatpush1.msra.mxu0 0.0
        %230 = vmatprep.subr.mxu0 0.0
        %231 = vmatpush1.msra.mxu0 0.0
        %232 = vmatprep.subr.mxu0 0.0
        %233 = vmatpush1.msra.mxu0 0.0
        %234 = vmatprep.subr.mxu0 0.0
        %235 = vmatpush1.msra.mxu0 0.0
        %236 = vmatprep.subr.mxu0 0.0
        %237 = vmatpush1.msra.mxu0 0.0
        %238 = vmatprep.subr.mxu0 0.0
        %239 = vmatpush1.msra.mxu0 0.0
        %240 = vmatprep.subr.mxu0 0.0
        %241 = vmatpush1.msra.mxu0 0.0
        %242 = vmatprep.subr.mxu0 0.0
        %243 = vmatpush1.msra.mxu0 0.0
        %244 = vmatprep.subr.mxu0 0.0
        %245 = vmatpush1.msra.mxu0 0.0
        %246 = vmatprep.subr.mxu0 0.0
        %247 = vmatpush1.msra.mxu0 0.0
        %248 = vmatprep.subr.mxu0 0.0
        %249 = vmatpush1.msra.mxu0 0.0
        %250 = vmatprep.subr.mxu0 0.0
        %251 = vmatpush1.msra.mxu0 0.0
        %252 = vmatprep.subr.mxu0 0.0
        %253 = vmatpush1.msra.mxu0 0.0
        %254 = vmatprep.subr.mxu0 0.0
        %255 = vmatpush1.msra.mxu0 0.0
        %256 = vmatprep.subr.mxu0 0.0
        %257 = vmatpush1.msra.mxu0 0.0
        %258 = vmatprep.subr.mxu0 0.0
        %259 = vmatpush1.msra.mxu0 0.0
        %260 = vmatprep.subr.mxu0 0.0
        %261 = vmatpush1.msra.mxu0 0.0
        %262 = vmatprep.subr.mxu0 0.0
        %263 = vmatpush1.msra.mxu0 0.0
        %264 = vmatprep.subr.mxu0 0.0
        %265 = vmatpush1.msra.mxu0 0.0
        %266 = vmatprep.subr.mxu0 0.0
        %267 = vmatpush1.msra.mxu0 0.0
        %268 = vmatprep.subr.mxu0 0.0
        %269 = vmatpush1.msra.mxu0 0.0
        %270 = vmatprep.subr.mxu0 0.0
        %271 = vmatpush1.msra.mxu0 0.0
        %272 = vmatprep.subr.mxu0 0.0
        %273 = vmatpush1.msra.mxu0 0.0
        %274 = vmatprep.subr.mxu0 0.0
        %275 = vmatpush1.msra.mxu0 0.0
        %276 = vmatprep.subr.mxu0 0.0
        %277 = vmatpush1.msra.mxu0 0.0
        %278 = vmatprep.subr.mxu0 0.0
        %279 = vmatpush1.msra.mxu0 0.0
        %280 = vmatprep.subr.mxu0 0.0
        %281 = vmatpush1.msra.mxu0 0.0
        %282 = vmatprep.subr.mxu0 0.0
        %283 = vmatpush1.msra.mxu0 0.0
        %284 = vmatprep.subr.mxu0 0.0
        %285 = vmatpush1.msra.mxu0 0.0
        %286 = vmatprep.subr.mxu0 0.0
        %287 = vmatpush1.msra.mxu0 0.0
        %288 = vmatprep.mubr.f32.mxu0 0.0
        %289 = vmatmul.mubr.f32.gmra.mrb[0].mxu0 %v222
        %v290 = vpop.f32.mrb[0].mxu0
        %v291 = vadd.f32 %v219, %v290
        %v292 = vpop.f32.mrb[0].mxu0
        %293 = vdwg.mxu0
        %294 = vst [vmem:[%s196] sm:$0xff] %v291
        %s295 = sand.u32 %s114, 1
        %s296 = scalar_lea.sflag [#allocation3], %s295
        %s297 = sand.u32 %s114, 1
        %s298 = smul.addr %s297, 8
        %s299 = scalar_lea.vmem [#allocation2], %s298
        // Predicated region
        $region33: #{tpu_custom_call.1} parent=31 // pred_check
          %p300 = pneg %p124
        $region34: #{tpu_custom_call.1} parent=31 // pred_check_branch
          %302 = sbr.rel (%p300) target = $region36
        $region35: #{tpu_custom_call.1} parent=31 // pred_region
          %s304 = ssub.s32 128, 128
          %305 = vsyncadd %s296, %s304
          %s306 = sadd.s32 %s21, %s22
          %s307 = smul.addr %s306, 128
          %s308 = scalar_lea.hbm %s3, %s307
          %s310 = sshll.u32 %s299, 4
          %s311 = int_to_ptr.vmem [resolvable:$true] %s310
          %313 = dma.vmem_to_hbm [thread:$0]  %s311, 128, %s308, %s296
        $region36: #{tpu_custom_call.1} parent=31 // pred_fallthru
          _
      $region32: #{tpu_custom_call.1} parent=5 // pred_fallthru
        _
      %p314 = scmp.le.s32.totalorder 2, %s12
      // Predicated region
      $region37: #{tpu_custom_call.1} parent=5 // pred_check
        %p315 = pneg %p314
      $region38: #{tpu_custom_call.1} parent=5 // pred_check_branch
        %317 = sbr.rel (%p315) target = $region40
      $region39: #{tpu_custom_call.1} parent=5 // pred_region
        %s318 = ssub.s32 %s12, 2
        // Predicated region
        $region41: #{tpu_custom_call.1} parent=39 // pred_check
          %p319 = pneg %p130
        $region42: #{tpu_custom_call.1} parent=39 // pred_check_branch
          %321 = sbr.rel (%p319) target = $region44
        $region43: #{tpu_custom_call.1} parent=39 // pred_region
          %s322 = sand.u32 %s115, 1
          %s323 = scalar_lea.sflag [#allocation3], %s322
          %s324 = sand.u32 %s115, 1
          %s325 = smul.addr %s324, 8
          %s326 = scalar_lea.vmem [#allocation2], %s325
          %327 = dma.done %s323, 128
        $region44: #{tpu_custom_call.1} parent=39 // pred_fallthru
          _
      $region40: #{tpu_custom_call.1} parent=5 // pred_fallthru
        _
    $region6: #{tpu_custom_call.1} parent=1 // loop_footer
      %s16 = sadd.s32 1, %s12
    $region7: #{tpu_custom_call.1} parent=1 // loop_footer_branch
      %11 = sbr.rel target = $region3
    $region8: #{tpu_custom_call.1} parent=1 // loop_exit
      _
    %328 = vsyncpa [#allocation3], 1
    %s329 = scalar_lea.sflag [#allocation3], 1
    %330 = vsyncpa %s329, 1

</llo_original>
